<compile_context>
chip_gen: v7x
topology: tpu7x:2x2x1
jax: 0.10.0
libtpu: 0.0.40
codegen_flags: <defaults>
</compile_context>

<pallas_src>
import functools

import jax
import jax.numpy as jnp
from jax.experimental import pallas as pl
from jax.experimental.pallas import tpu as pltpu

GROUP_ORDER = 2                     # |C2|
IN_FIELDS = 8                       # assumed policy_in_type: 8 regular fields
IN_DIM = IN_FIELDS * GROUP_ORDER    # 16
UNITS = [256, 256]                  # from the module: units = [256, 256]
EPS = 1e-5


def _round_up(x, m):
    return (x + m - 1) // m * m


def _c2_equivariant_weight(key, n_fields_out, n_fields_in):
    """Expanded escnn-style equivariant weight between C2 regular-rep field types.

    Each (out_field, in_field) 2x2 block is a C2-circulant [[a, b], [b, a]], which is
    exactly the space of C2-equivariant maps between regular reps.
    Returns W of shape (2*n_fields_out, 2*n_fields_in).
    """
    ka, kb = jax.random.split(key)
    fan_in = n_fields_in * GROUP_ORDER
    std = 1.0 / jnp.sqrt(jnp.float32(fan_in))
    a = jax.random.normal(ka, (n_fields_out, n_fields_in), jnp.float32) * std
    b = jax.random.normal(kb, (n_fields_out, n_fields_in), jnp.float32) * std
    blk = jnp.zeros((n_fields_out, GROUP_ORDER, n_fields_in, GROUP_ORDER), jnp.float32)
    blk = blk.at[:, 0, :, 0].set(a).at[:, 1, :, 1].set(a)
    blk = blk.at[:, 0, :, 1].set(b).at[:, 1, :, 0].set(b)
    return blk.reshape(n_fields_out * GROUP_ORDER, n_fields_in * GROUP_ORDER)


def _iid_bn_affine(key, n_fields):
    """Eval-mode IIDBatchNorm1d folded into per-channel (scale, shift).

    escnn keeps one (mean, var, gamma, beta) scalar per field; for regular reps it acts
    uniformly over the field's GROUP_ORDER channels, so the fold is a per-field scalar
    repeated along the field.
    """
    k1, k2, k3, k4 = jax.random.split(key, 4)
    gamma = 1.0 + 0.1 * jax.random.normal(k1, (n_fields,), jnp.float32)
    beta = 0.1 * jax.random.normal(k2, (n_fields,), jnp.float32)
    mu = 0.1 * jax.random.normal(k3, (n_fields,), jnp.float32)
    var = jnp.abs(1.0 + 0.1 * jax.random.normal(k4, (n_fields,), jnp.float32))
    scale_f = gamma * jax.lax.rsqrt(var + EPS)
    shift_f = beta - mu * scale_f
    scale = jnp.repeat(scale_f, GROUP_ORDER).reshape(1, -1)
    shift = jnp.repeat(shift_f, GROUP_ORDER).reshape(1, -1)
    return scale, shift


# ----------------------------------------------------------------------------------- #
# Pallas kernel                                                                        #
# ----------------------------------------------------------------------------------- #
def emlp_kernel(x_ref, w1_ref, w2_ref, aff_ref, o_ref, *, fold_s2):
    # layer 0: equivariant Linear (bias zeroed) -> ReLU.  x arrives f32 and is cast to
    # bf16 here (one cheap VPU pass per tile, hidden under the MXU / DMA).
    xb = x_ref[...].astype(jnp.bfloat16)
    h = jnp.dot(xb, w1_ref[...], preferred_element_type=jnp.float32)
    h = jnp.maximum(h, 0.0)
    # layer 1: equivariant Linear with BN0 (and optionally BN1 scale) pre-folded into
    # W2 / bias on the host.  aff rows: [bias, (s2), b2].
    z = jnp.dot(h.astype(w2_ref.dtype), w2_ref[...], preferred_element_type=jnp.float32)
    z = jnp.maximum(z + aff_ref[0:1, :], 0.0)
    if fold_s2:
        # relu(z)*s2 + b2 == relu(z*s2) + b2 (s2 >= 0), with s2 folded into W2/bias.
        o_ref[...] = (z + aff_ref[1:2, :]).astype(o_ref.dtype)
    else:
        o_ref[...] = (z * aff_ref[1:2, :] + aff_ref[2:3, :]).astype(o_ref.dtype)


def _vmem_budget_bytes():
    """Conservative scoped-VMEM budget (half of physical; v7x fallback if unknown)."""
    try:
        phys = int(pltpu.get_tpu_info().vmem_capacity_bytes)
    except Exception:
        phys = 64 << 20          # v7x per-TensorCore VMEM (smallest current part)
    return int(min(phys // 2, 64 << 20))


def _pick_tile_b(batch, out_itemsize, vmem_budget):
    """Largest batch tile that fits the budget: multiple of 256 when big, else of 8."""
    # Per-row VMEM estimate: x f32 lane-padded to 128 (double-buffered) + out
    # (double-buffered) + ~3 f32 (tile,256) internal temporaries + one bf16 h copy.
    per_row = 2 * 128 * 4 + 2 * 256 * out_itemsize + 3 * 256 * 4 + 256 * 2
    fixed = 2 << 20              # weights + affine rows + compiler slack
    max_rows = max(8, (vmem_budget - fixed) // per_row)
    tile = min(4096, int(max_rows))            # v7x-safe cap
    tile = min(tile, _round_up(batch, 8))      # never exceed the batch
    if batch >= 512:
        # keep >=2 grid steps so ("parallel",) can feed both v7x TensorCores
        tile = min(tile, _round_up(-(-batch // 2), 256))
    if tile >= 256:
        tile = (tile // 256) * 256
    else:
        tile = _round_up(tile, 8)
    return max(8, tile)


def c2_encoder_forward(x, w1_t, w2_t, s1, b1, s2, b2, *,
                       tile_b=None, out_dtype=jnp.bfloat16, use_pallas=None):
    """x: (B, IN_DIM) f32; w1_t: (IN_DIM, 256); w2_t: (256, 256); s*/b*: (1, 256)."""
    B, in_dim = x.shape
    d1 = w1_t.shape[1]
    d2 = w2_t.shape[1]

    if use_pallas is None:
        use_pallas = B >= 1024
    if not use_pallas:
        # Tiny batches: pure launch overhead for a kernel; XLA fuses this small MLP.
        h = jnp.maximum(x @ w1_t, 0.0) * s1 + b1
        return (jnp.maximum(h @ w2_t, 0.0) * s2 + b2).astype(out_dtype)

    # --- host-side folds -------------------------------------------------------------
    # Exact fold of BN0 affine into the second linear:
    #   (relu(x@W1)*s1 + b1) @ W2 == relu(x@W1) @ (diag(s1)@W2) + (b1@W2)
    w2_eff = s1.reshape(-1, 1) * w2_t                               # (d1, d2) f32
    bias2 = (b1.reshape(1, -1) @ w2_t).astype(jnp.float32)          # (1, d2)  f32

    # Fold BN1 scale too iff it is provably non-negative (relu(z)*s2 == relu(z*s2)).
    try:
        fold_s2 = bool(jnp.all(s2 >= 0.0))
    except jax.errors.ConcretizationTypeError:
        fold_s2 = False
    s2r = s2.reshape(1, -1).astype(jnp.float32)
    b2r = b2.reshape(1, -1).astype(jnp.float32)
    if fold_s2:
        w2_eff = w2_eff * s2r
        bias2 = bias2 * s2r
        aff = jnp.concatenate([bias2, b2r], axis=0)                 # (2, d2) f32
    else:
        aff = jnp.concatenate([bias2, s2r, b2r], axis=0)            # (3, d2) f32

    # bf16 MXU weights, f32 accumulation in-kernel. x is cast in-kernel (stays f32 here).
    w1_bf = w1_t.astype(jnp.bfloat16)
    w2_bf = w2_eff.astype(jnp.bfloat16)

    # --- tiling ----------------------------------------------------------------------
    vmem_budget = _vmem_budget_bytes()
    out_itemsize = jnp.dtype(out_dtype).itemsize
    if tile_b is None:
        tile = _pick_tile_b(B, out_itemsize, vmem_budget)
    else:
        tile = max(8, _round_up(min(int(tile_b), _round_up(B, 8)), 8))
    nb = pl.cdiv(B, tile)   # last block (if partial) gets masked stores; no host pad/slice

    out = pl.pallas_call(
        functools.partial(emlp_kernel, fold_s2=fold_s2),
        out_shape=jax.ShapeDtypeStruct((B, d2), out_dtype),
        grid=(nb,),
        in_specs=[
            pl.BlockSpec((tile, in_dim), lambda i: (i, 0)),       # activations: pipelined
            pl.BlockSpec((in_dim, d1), lambda i: (0, 0)),         # weights: VMEM-resident
            pl.BlockSpec((d1, d2), lambda i: (0, 0)),
            pl.BlockSpec((aff.shape[0], d2), lambda i: (0, 0)),   # stacked bias/scale/shift
        ],
        out_specs=pl.BlockSpec((tile, d2), lambda i: (i, 0)),
        compiler_params=pltpu.CompilerParams(
            dimension_semantics=("parallel",),      # shard batch tiles across v7x's 2 TCs
            vmem_limit_bytes=vmem_budget,
        ),
    )(x, w1_bf, w2_bf, aff)
    return out


def reference_forward(x, w1_t, w2_t, s1, b1, s2, b2):
    """Pure-JAX f32 reference of the original (un-folded) module semantics."""
    h = jnp.maximum(x @ w1_t, 0.0) * s1 + b1
    h = jnp.maximum(h @ w2_t, 0.0) * s2 + b2
    return h


if __name__ == "__main__":
    key = jax.random.PRNGKey(0)
    kx, kw1, kw2, kb1, kb2, kx2 = jax.random.split(key, 6)

    f1 = UNITS[0] // GROUP_ORDER  # 128 regular fields -> 256 channels
    f2 = UNITS[1] // GROUP_ORDER

    w1_t = _c2_equivariant_weight(kw1, f1, IN_FIELDS).T    # (16, 256)
    w2_t = _c2_equivariant_weight(kw2, f2, f1).T           # (256, 256)
    s1, b1 = _iid_bn_affine(kb1, f1)                       # (1, 256) each
    s2, b2 = _iid_bn_affine(kb2, f2)                       # (1, 256) each

    # Small batch, f32 output (exact module dtype); force the Pallas path so the kernel
    # is exercised (the auto fast-path would otherwise handle B this small in plain jnp).
    B = 4
    x = jax.random.normal(kx, (B, IN_DIM), jnp.float32)
    out = c2_encoder_forward(x, w1_t, w2_t, s1, b1, s2, b2,
                             out_dtype=jnp.float32, use_pallas=True)
    out = jax.block_until_ready(out)
    ref = reference_forward(x, w1_t, w2_t, s1, b1, s2, b2)
    assert out.shape == (B, UNITS[-1])
    # bf16 MXU operands (f32 accumulation) -> compare against f32 reference loosely.
    assert jnp.allclose(out, ref, atol=3e-2, rtol=3e-2), float(jnp.max(jnp.abs(out - ref)))

    # Multi-tile grid + masked tail block + default bf16 output.
    B2 = 300
    x2 = jax.random.normal(kx2, (B2, IN_DIM), jnp.float32)
    out2 = c2_encoder_forward(x2, w1_t, w2_t, s1, b1, s2, b2,
                              tile_b=256, use_pallas=True)
    out2 = jax.block_until_ready(out2)
    ref2 = reference_forward(x2, w1_t, w2_t, s1, b1, s2, b2)
    assert out2.shape == (B2, UNITS[-1])
    err2 = jnp.abs(out2.astype(jnp.float32) - ref2)
    assert jnp.allclose(out2.astype(jnp.float32), ref2, atol=3e-2, rtol=3e-2), float(err2.max())

    print("KERNEL_OK")
</pallas_src>

<mosaic_0001>
module attributes {stable_mosaic.version = 11 : i64} {
  func.func @emlp_kernel(%arg0: i32, %arg1: memref<8x16xf32, #tpu.memory_space<vmem>>, %arg2: memref<16x256xbf16, #tpu.memory_space<vmem>>, %arg3: memref<256x256xbf16, #tpu.memory_space<vmem>>, %arg4: memref<2x256xf32, #tpu.memory_space<vmem>>, %arg5: memref<8x256xf32, #tpu.memory_space<vmem>>) attributes {dimension_semantics = [#tpu.dimension_semantics<parallel>], iteration_bounds = array<i64: 1>, scalar_prefetch = 0 : i64, scratch_operands = 0 : i64, tpu.core_type = #tpu.core_type<tc>, window_params = [{transform_indices = @transform_0, window_bounds = array<i64: 8, 16>}, {pipeline_mode = #tpu.pipeline_mode<synchronous>, transform_indices = @transform_1, window_bounds = array<i64: 16, 256>}, {pipeline_mode = #tpu.pipeline_mode<synchronous>, transform_indices = @transform_2, window_bounds = array<i64: 256, 256>}, {pipeline_mode = #tpu.pipeline_mode<synchronous>, transform_indices = @transform_3, window_bounds = array<i64: 2, 256>}, {transform_indices = @transform_4, window_bounds = array<i64: 8, 256>}]} {
    %c0 = arith.constant 0 : index
    %c0_0 = arith.constant 0 : index
    %0 = vector.load %arg1[%c0, %c0_0] : memref<8x16xf32, #tpu.memory_space<vmem>>, vector<8x16xf32>
    %1 = arith.truncf %0 : vector<8x16xf32> to vector<8x16xbf16>
    %c0_1 = arith.constant 0 : index
    %c0_2 = arith.constant 0 : index
    %2 = vector.load %arg2[%c0_1, %c0_2] : memref<16x256xbf16, #tpu.memory_space<vmem>>, vector<16x256xbf16>
    %cst = arith.constant dense<0.000000e+00> : vector<8x256xf32>
    %3 = tpu.matmul %1, %2, %cst {dimension_numbers = #tpu.dot_dimension_numbers<[1], [0], [0], [1], [0, 0, 1, 1], [], []>} : vector<8x16xbf16>, vector<16x256xbf16>, vector<8x256xf32> -> vector<8x256xf32>
    %cst_3 = arith.constant 0.000000e+00 : f32
    %4 = vector.broadcast %cst_3 : f32 to vector<8x256xf32>
    %5 = arith.maximumf %3, %4 : vector<8x256xf32>
    %6 = arith.truncf %5 : vector<8x256xf32> to vector<8x256xbf16>
    %c0_4 = arith.constant 0 : index
    %c0_5 = arith.constant 0 : index
    %7 = vector.load %arg3[%c0_4, %c0_5] : memref<256x256xbf16, #tpu.memory_space<vmem>>, vector<256x256xbf16>
    %cst_6 = arith.constant dense<0.000000e+00> : vector<8x256xf32>
    %8 = tpu.matmul %6, %7, %cst_6 {dimension_numbers = #tpu.dot_dimension_numbers<[1], [0], [0], [1], [0, 0, 1, 1], [], []>} : vector<8x256xbf16>, vector<256x256xbf16>, vector<8x256xf32> -> vector<8x256xf32>
    %c0_7 = arith.constant 0 : index
    %c0_8 = arith.constant 0 : index
    %9 = vector.load %arg4[%c0_7, %c0_8] : memref<2x256xf32, #tpu.memory_space<vmem>>, vector<1x256xf32>
    %10 = vector.broadcast %9 : vector<1x256xf32> to vector<8x256xf32>
    %11 = arith.addf %8, %10 : vector<8x256xf32>
    %cst_9 = arith.constant 0.000000e+00 : f32
    %12 = vector.broadcast %cst_9 : f32 to vector<8x256xf32>
    %13 = arith.maximumf %11, %12 : vector<8x256xf32>
    %c1 = arith.constant 1 : index
    %c0_10 = arith.constant 0 : index
    %14 = vector.load %arg4[%c1, %c0_10] : memref<2x256xf32, #tpu.memory_space<vmem>>, vector<1x256xf32>
    %15 = vector.broadcast %14 : vector<1x256xf32> to vector<8x256xf32>
    %16 = arith.addf %13, %15 : vector<8x256xf32>
    %c0_11 = arith.constant 0 : index
    %c0_12 = arith.constant 0 : index
    %17 = vector.load %arg5[%c0_11, %c0_12] : memref<8x256xf32, #tpu.memory_space<vmem>>, vector<8x256xf32>
    tpu.vector_store %arg5[%c0_11, %c0_12], %16 {strides = array<i32>} : memref<8x256xf32, #tpu.memory_space<vmem>>, vector<8x256xf32>,
    return
  }
  func.func @transform_0(%arg0: i32) -> (i32, i32) {
    %c0_i32 = arith.constant 0 : i32
    %c0_i32_0 = arith.constant 0 : i32
    return %arg0, %c0_i32 : i32, i32
  }
  func.func @transform_1(%arg0: i32) -> (i32, i32) {
    %c0_i32 = arith.constant 0 : i32
    %c0_i32_0 = arith.constant 0 : i32
    %c0_i32_1 = arith.constant 0 : i32
    return %c0_i32, %c0_i32_0 : i32, i32
  }
  func.func @transform_2(%arg0: i32) -> (i32, i32) {
    %c0_i32 = arith.constant 0 : i32
    %c0_i32_0 = arith.constant 0 : i32
    %c0_i32_1 = arith.constant 0 : i32
    return %c0_i32, %c0_i32_0 : i32, i32
  }
  func.func @transform_3(%arg0: i32) -> (i32, i32) {
    %c0_i32 = arith.constant 0 : i32
    %c0_i32_0 = arith.constant 0 : i32
    %c0_i32_1 = arith.constant 0 : i32
    return %c0_i32, %c0_i32_0 : i32, i32
  }
  func.func @transform_4(%arg0: i32) -> (i32, i32) {
    %c0_i32 = arith.constant 0 : i32
    %c0_i32_0 = arith.constant 0 : i32
    return %arg0, %c0_i32 : i32, i32
  }
}

</mosaic_0001>

<llo_original>
// kernel: tpu_custom_call.1
$region0: #{tpu_custom_call.1}
  #allocation0 [shape = 'u32[]', space=smem, size = 0x4, offset = 0x4, fixed_abs, tag = 'smem constant byte address 0x4 - core index']
  #allocation1 [shape = 'u32[144,128]{1,0:T(1,128)}', space=vmem, size = 0x12000, scoped, tag = 'internal scratch']
  %s0 = inlined_call_operand.hbm [shape: f32[4,16], index: 0, kind: input, shape index: {}]
  %s1 = inlined_call_operand.hbm [shape: bf16[16,256], index: 1, kind: input, shape index: {}]
  %s2 = inlined_call_operand.hbm [shape: bf16[256,256], index: 2, kind: input, shape index: {}]
  %s3 = inlined_call_operand.vmem [shape: f32[2,256], index: 3, kind: input, shape index: {}]
  %s4 = inlined_call_operand.hbm [shape: f32[4,256], index: 4, kind: output, shape index: {}]
  %s5 = sld [smem:[#allocation0]]
  $region38: #{tpu_custom_call.1} parent=0
    _
  %s7 = ssub.s32 1, %s5
  %s8 = scalar_select 0, %s7, %s5
  $region1: #{tpu_custom_call.1} parent=0
    #allocation2 [shape = 'u8[4096]{0}', space=vmem, size = 0x1000, scoped, tag = 'input window, operand 0, single buffered']
    #allocation3 [shape = 's32[1]{0}', space=sflag, size = 0x4, scoped, tag = 'scoped memory for tpu_custom_call.1']
    #allocation4 [shape = 's32[1]{0}', space=sflag, size = 0x4, scoped, tag = 'scoped memory for tpu_custom_call.1']
    #allocation5 [shape = 'u8[8192]{0}', space=vmem, size = 0x2000, scoped, tag = 'input window, operand 1, single buffered']
    #allocation6 [shape = 's32[1]{0}', space=sflag, size = 0x4, scoped, tag = 'scoped memory for tpu_custom_call.1']
    #allocation7 [shape = 'u8[131072]{0}', space=vmem, size = 0x20000, scoped, tag = 'input window, operand 2, single buffered']
    #allocation8 [shape = 'u8[8192]{0}', space=vmem, size = 0x2000, scoped, tag = 'output window, operand 0, single buffered']
    %9 = vsyncpa [#allocation3], 0
    %10 = vsyncpa [#allocation6], 0
    %11 = vsyncpa [#allocation4], 0
    // Predicated region
    $region2: #{tpu_custom_call.1} parent=1 // pred_check
      _
    $region3: #{tpu_custom_call.1} parent=1 // pred_check_branch
      %13 = sbr.rel (0) target = $region5
    $region4: #{tpu_custom_call.1} parent=1 // pred_region
      %s15 = ssub.s32 128, 64
      %16 = vsyncadd [#allocation3], %s15
      %s17 = sshll.u32 [#allocation2], 4
      %s18 = int_to_ptr.vmem [resolvable:$true] %s17
      %23 = dma.hbm_to_vmem [thread:$0]  %s0, 64, %s18, [#allocation3], 64, 64, 4
    $region5: #{tpu_custom_call.1} parent=1 // pred_fallthru
      _
    // Predicated region
    $region6: #{tpu_custom_call.1} parent=1 // pred_check
      _
    $region7: #{tpu_custom_call.1} parent=1 // pred_check_branch
      %25 = sbr.rel (0) target = $region9
    $region8: #{tpu_custom_call.1} parent=1 // pred_region
      %s27 = ssub.s32 256, 256
      %28 = vsyncadd [#allocation6], %s27
      %s29 = sshll.u32 [#allocation5], 4
      %s30 = int_to_ptr.vmem [resolvable:$true] %s29
      %35 = dma.hbm_to_vmem [thread:$0]  %s1, 256, %s30, [#allocation6], 128, 128, 8
    $region9: #{tpu_custom_call.1} parent=1 // pred_fallthru
      _
    // Predicated region
    $region10: #{tpu_custom_call.1} parent=1 // pred_check
      _
    $region11: #{tpu_custom_call.1} parent=1 // pred_check_branch
      %37 = sbr.rel (0) target = $region13
    $region12: #{tpu_custom_call.1} parent=1 // pred_region
      %s39 = ssub.s32 4096, 4096
      %40 = vsyncadd [#allocation6], %s39
      %s41 = sshll.u32 [#allocation7], 4
      %s42 = int_to_ptr.vmem [resolvable:$true] %s41
      %47 = dma.hbm_to_vmem [thread:$0]  %s2, 4096, %s42, [#allocation6], 128, 128, 8
    $region13: #{tpu_custom_call.1} parent=1 // pred_fallthru
      _
    // Predicated region
    $region14: #{tpu_custom_call.1} parent=1 // pred_check
      _
    $region15: #{tpu_custom_call.1} parent=1 // pred_check_branch
      %49 = sbr.rel (0) target = $region17
    $region16: #{tpu_custom_call.1} parent=1 // pred_region
      _
    $region17: #{tpu_custom_call.1} parent=1 // pred_fallthru
      _
    // Predicated region
    $region18: #{tpu_custom_call.1} parent=1 // pred_check
      _
    $region19: #{tpu_custom_call.1} parent=1 // pred_check_branch
      %51 = sbr.rel (0) target = $region21
    $region20: #{tpu_custom_call.1} parent=1 // pred_region
      %52 = dma.done [#allocation3], 128
    $region21: #{tpu_custom_call.1} parent=1 // pred_fallthru
      _
    // Predicated region
    $region22: #{tpu_custom_call.1} parent=1 // pred_check
      _
    $region23: #{tpu_custom_call.1} parent=1 // pred_check_branch
      %54 = sbr.rel (0) target = $region25
    $region24: #{tpu_custom_call.1} parent=1 // pred_region
      %55 = dma.done [#allocation6], 256
    $region25: #{tpu_custom_call.1} parent=1 // pred_fallthru
      _
    // Predicated region
    $region26: #{tpu_custom_call.1} parent=1 // pred_check
      _
    $region27: #{tpu_custom_call.1} parent=1 // pred_check_branch
      %57 = sbr.rel (0) target = $region29
    $region28: #{tpu_custom_call.1} parent=1 // pred_region
      %58 = dma.done [#allocation6], 4096
    $region29: #{tpu_custom_call.1} parent=1 // pred_fallthru
      _
    %v60 = vld [vmem:[#allocation2] sm:$0xff]
    %v61 = vpack.c.bf16 %v60, %v60
    %v62 = vld [vmem:[#allocation5] sm:$0xff]
    %v63 = vld [vmem:[#allocation5 + $0x8] sm:$0xff]
    %v66 = vunpack.c.l.b16 %v62
    %v67 = vunpack.c.h.b16 %v62
    %v68 = vunpack.c.l.b16 %v63
    %v69 = vunpack.c.h.b16 %v63
    %v70 = vpack.c.b16 %v68, %v66
    %v71 = vpack.c.b16 %v69, %v67
    %vm74 = vcmask 130048
    %v76 = vsel %vm74, %v61, 0
    %78 = vmatprep.subr.bf16.mxu0 %v71
    %79 = vmatpush1.bf16.msra.mxu0 %v70
    %80 = vmatprep.subr.bf16.mxu0 0
    %81 = vmatpush1.bf16.msra.mxu0 0
    %82 = vmatprep.subr.bf16.mxu0 0
    %83 = vmatpush1.bf16.msra.mxu0 0
    %84 = vmatprep.subr.bf16.mxu0 0
    %85 = vmatpush1.bf16.msra.mxu0 0
    %86 = vmatprep.subr.bf16.mxu0 0
    %87 = vmatpush1.bf16.msra.mxu0 0
    %88 = vmatprep.subr.bf16.mxu0 0
    %89 = vmatpush1.bf16.msra.mxu0 0
    %90 = vmatprep.subr.bf16.mxu0 0
    %91 = vmatpush1.bf16.msra.mxu0 0
    %92 = vmatprep.subr.bf16.mxu0 0
    %93 = vmatpush1.bf16.msra.mxu0 0
    %94 = vmatprep.subr.bf16.mxu0 0
    %95 = vmatpush1.bf16.msra.mxu0 0
    %96 = vmatprep.subr.bf16.mxu0 0
    %97 = vmatpush1.bf16.msra.mxu0 0
    %98 = vmatprep.subr.bf16.mxu0 0
    %99 = vmatpush1.bf16.msra.mxu0 0
    %100 = vmatprep.subr.bf16.mxu0 0
    %101 = vmatpush1.bf16.msra.mxu0 0
    %102 = vmatprep.subr.bf16.mxu0 0
    %103 = vmatpush1.bf16.msra.mxu0 0
    %104 = vmatprep.subr.bf16.mxu0 0
    %105 = vmatpush1.bf16.msra.mxu0 0
    %106 = vmatprep.subr.bf16.mxu0 0
    %107 = vmatpush1.bf16.msra.mxu0 0
    %108 = vmatprep.subr.bf16.mxu0 0
    %109 = vmatpush1.bf16.msra.mxu0 0
    %110 = vmatprep.mubr.bf16.mxu0 0
    %111 = vmatmul.mubr.bf16.gmra.mrb[0].mxu0 %v76
    %v112 = vpop.f32.mrb[0].mxu0
    %v113 = vadd.f32 0.0, %v112
    %v114 = vpop.f32.mrb[0].mxu0
    %v115 = vadd.f32 0.0, %v114
    %v116 = vpop.f32.mrb[0].mxu0
    %v117 = vpop.f32.mrb[0].mxu0
    %118 = vdwg.mxu0
    %v119 = vmax.f32 %v113, 0.0
    %v120 = vmax.f32 %v115, 0.0
    %v121 = vpack.c.bf16 %v119, %v119
    %v122 = vpack.c.bf16 %v120, %v120
    %v123 = vld [vmem:[#allocation7] sm:$0xff]
    %v124 = vld [vmem:[#allocation7 + $0x8] sm:$0xff]
    %v125 = vld [vmem:[#allocation7 + $0x10] sm:$0xff]
    %v126 = vld [vmem:[#allocation7 + $0x18] sm:$0xff]
    %v127 = vld [vmem:[#allocation7 + $0x20] sm:$0xff]
    %v128 = vld [vmem:[#allocation7 + $0x28] sm:$0xff]
    %v129 = vld [vmem:[#allocation7 + $0x30] sm:$0xff]
    %v130 = vld [vmem:[#allocation7 + $0x38] sm:$0xff]
    %v131 = vld [vmem:[#allocation7 + $0x40] sm:$0xff]
    %v132 = vld [vmem:[#allocation7 + $0x48] sm:$0xff]
    %v133 = vld [vmem:[#allocation7 + $0x50] sm:$0xff]
    %v134 = vld [vmem:[#allocation7 + $0x58] sm:$0xff]
    %v135 = vld [vmem:[#allocation7 + $0x60] sm:$0xff]
    %v136 = vld [vmem:[#allocation7 + $0x68] sm:$0xff]
    %v137 = vld [vmem:[#allocation7 + $0x70] sm:$0xff]
    %v138 = vld [vmem:[#allocation7 + $0x78] sm:$0xff]
    %v139 = vld [vmem:[#allocation7 + $0x80] sm:$0xff]
    %v140 = vld [vmem:[#allocation7 + $0x88] sm:$0xff]
    %v141 = vld [vmem:[#allocation7 + $0x90] sm:$0xff]
    %v142 = vld [vmem:[#allocation7 + $0x98] sm:$0xff]
    %v143 = vld [vmem:[#allocation7 + $0xa0] sm:$0xff]
    %v144 = vld [vmem:[#allocation7 + $0xa8] sm:$0xff]
    %v145 = vld [vmem:[#allocation7 + $0xb0] sm:$0xff]
    %v146 = vld [vmem:[#allocation7 + $0xb8] sm:$0xff]
    %v147 = vld [vmem:[#allocation7 + $0xc0] sm:$0xff]
    %v148 = vld [vmem:[#allocation7 + $0xc8] sm:$0xff]
    %v149 = vld [vmem:[#allocation7 + $0xd0] sm:$0xff]
    %v150 = vld [vmem:[#allocation7 + $0xd8] sm:$0xff]
    %v151 = vld [vmem:[#allocation7 + $0xe0] sm:$0xff]
    %v152 = vld [vmem:[#allocation7 + $0xe8] sm:$0xff]
    %v153 = vld [vmem:[#allocation7 + $0xf0] sm:$0xff]
    %v154 = vld [vmem:[#allocation7 + $0xf8] sm:$0xff]
    %v155 = vld [vmem:[%s3] ss:$2 sm:$0x3]
    %v157 = vlaneseq
    %v158 = vshrl.u32 %v157, 7
    %v159 = vsub.s32 0, %v158
    %v160 = vrot.slane %v155, %v159
    %v161 = vlaneseq
    %v162 = vshrl.u32 %v161, 7
    %v163 = vsub.s32 1, %v162
    %v164 = vrot.slane %v155, %v163
    %v199 = vunpack.c.l.b16 %v123
    %v200 = vunpack.c.h.b16 %v123
    %v201 = vunpack.c.l.b16 %v124
    %v202 = vunpack.c.h.b16 %v124
    %v203 = vunpack.c.l.b16 %v125
    %v204 = vunpack.c.h.b16 %v125
    %v205 = vunpack.c.l.b16 %v126
    %v206 = vunpack.c.h.b16 %v126
    %v207 = vunpack.c.l.b16 %v127
    %v208 = vunpack.c.h.b16 %v127
    %v209 = vunpack.c.l.b16 %v128
    %v210 = vunpack.c.h.b16 %v128
    %v211 = vunpack.c.l.b16 %v129
    %v212 = vunpack.c.h.b16 %v129
    %v213 = vunpack.c.l.b16 %v130
    %v214 = vunpack.c.h.b16 %v130
    %v215 = vunpack.c.l.b16 %v131
    %v216 = vunpack.c.h.b16 %v131
    %v217 = vunpack.c.l.b16 %v132
    %v218 = vunpack.c.h.b16 %v132
    %v219 = vunpack.c.l.b16 %v133
    %v220 = vunpack.c.h.b16 %v133
    %v221 = vunpack.c.l.b16 %v134
    %v222 = vunpack.c.h.b16 %v134
    %v223 = vunpack.c.l.b16 %v135
    %v224 = vunpack.c.h.b16 %v135
    %v225 = vunpack.c.l.b16 %v136
    %v226 = vunpack.c.h.b16 %v136
    %v227 = vunpack.c.l.b16 %v137
    %v228 = vunpack.c.h.b16 %v137
    %v229 = vunpack.c.l.b16 %v138
    %v230 = vunpack.c.h.b16 %v138
    %v231 = vunpack.c.l.b16 %v139
    %v232 = vunpack.c.h.b16 %v139
    %v233 = vunpack.c.l.b16 %v140
    %v234 = vunpack.c.h.b16 %v140
    %v235 = vunpack.c.l.b16 %v141
    %v236 = vunpack.c.h.b16 %v141
    %v237 = vunpack.c.l.b16 %v142
    %v238 = vunpack.c.h.b16 %v142
    %v239 = vunpack.c.l.b16 %v143
    %v240 = vunpack.c.h.b16 %v143
    %v241 = vunpack.c.l.b16 %v144
    %v242 = vunpack.c.h.b16 %v144
    %v243 = vunpack.c.l.b16 %v145
    %v244 = vunpack.c.h.b16 %v145
    %v245 = vunpack.c.l.b16 %v146
    %v246 = vunpack.c.h.b16 %v146
    %v247 = vunpack.c.l.b16 %v147
    %v248 = vunpack.c.h.b16 %v147
    %v249 = vunpack.c.l.b16 %v148
    %v250 = vunpack.c.h.b16 %v148
    %v251 = vunpack.c.l.b16 %v149
    %v252 = vunpack.c.h.b16 %v149
    %v253 = vunpack.c.l.b16 %v150
    %v254 = vunpack.c.h.b16 %v150
    %v255 = vunpack.c.l.b16 %v151
    %v256 = vunpack.c.h.b16 %v151
    %v257 = vunpack.c.l.b16 %v152
    %v258 = vunpack.c.h.b16 %v152
    %v259 = vunpack.c.l.b16 %v153
    %v260 = vunpack.c.h.b16 %v153
    %v261 = vunpack.c.l.b16 %v154
    %v262 = vunpack.c.h.b16 %v154
    %v263 = vpack.c.b16 %v201, %v199
    %v264 = vpack.c.b16 %v202, %v200
    %v265 = vpack.c.b16 %v205, %v203
    %v266 = vpack.c.b16 %v206, %v204
    %v267 = vpack.c.b16 %v209, %v207
    %v268 = vpack.c.b16 %v210, %v208
    %v269 = vpack.c.b16 %v213, %v211
    %v270 = vpack.c.b16 %v214, %v212
    %v271 = vpack.c.b16 %v217, %v215
    %v272 = vpack.c.b16 %v218, %v216
    %v273 = vpack.c.b16 %v221, %v219
    %v274 = vpack.c.b16 %v222, %v220
    %v275 = vpack.c.b16 %v225, %v223
    %v276 = vpack.c.b16 %v226, %v224
    %v277 = vpack.c.b16 %v229, %v227
    %v278 = vpack.c.b16 %v230, %v228
    %v279 = vpack.c.b16 %v233, %v231
    %v280 = vpack.c.b16 %v234, %v232
    %v281 = vpack.c.b16 %v237, %v235
    %v282 = vpack.c.b16 %v238, %v236
    %v283 = vpack.c.b16 %v241, %v239
    %v284 = vpack.c.b16 %v242, %v240
    %v285 = vpack.c.b16 %v245, %v243
    %v286 = vpack.c.b16 %v246, %v244
    %v287 = vpack.c.b16 %v249, %v247
    %v288 = vpack.c.b16 %v250, %v248
    %v289 = vpack.c.b16 %v253, %v251
    %v290 = vpack.c.b16 %v254, %v252
    %v291 = vpack.c.b16 %v257, %v255
    %v292 = vpack.c.b16 %v258, %v256
    %v293 = vpack.c.b16 %v261, %v259
    %v294 = vpack.c.b16 %v262, %v260
    %327 = vmatprep.subr.bf16.mxu0 %v264
    %328 = vmatpush1.bf16.msra.mxu0 %v263
    %329 = vmatprep.subr.bf16.mxu0 %v266
    %330 = vmatpush1.bf16.msra.mxu0 %v265
    %331 = vmatprep.subr.bf16.mxu0 %v268
    %332 = vmatpush1.bf16.msra.mxu0 %v267
    %333 = vmatprep.subr.bf16.mxu0 %v270
    %334 = vmatpush1.bf16.msra.mxu0 %v269
    %335 = vmatprep.subr.bf16.mxu0 %v272
    %336 = vmatpush1.bf16.msra.mxu0 %v271
    %337 = vmatprep.subr.bf16.mxu0 %v274
    %338 = vmatpush1.bf16.msra.mxu0 %v273
    %339 = vmatprep.subr.bf16.mxu0 %v276
    %340 = vmatpush1.bf16.msra.mxu0 %v275
    %341 = vmatprep.subr.bf16.mxu0 %v278
    %342 = vmatpush1.bf16.msra.mxu0 %v277
    %343 = vmatprep.subr.bf16.mxu0 %v280
    %344 = vmatpush1.bf16.msra.mxu0 %v279
    %345 = vmatprep.subr.bf16.mxu0 %v282
    %346 = vmatpush1.bf16.msra.mxu0 %v281
    %347 = vmatprep.subr.bf16.mxu0 %v284
    %348 = vmatpush1.bf16.msra.mxu0 %v283
    %349 = vmatprep.subr.bf16.mxu0 %v286
    %350 = vmatpush1.bf16.msra.mxu0 %v285
    %351 = vmatprep.subr.bf16.mxu0 %v288
    %352 = vmatpush1.bf16.msra.mxu0 %v287
    %353 = vmatprep.subr.bf16.mxu0 %v290
    %354 = vmatpush1.bf16.msra.mxu0 %v289
    %355 = vmatprep.subr.bf16.mxu0 %v292
    %356 = vmatpush1.bf16.msra.mxu0 %v291
    %357 = vmatprep.subr.bf16.mxu0 %v294
    %358 = vmatpush1.bf16.msra.mxu0 %v293
    %359 = vmatprep.mubr.bf16.mxu0 %v122
    %360 = vmatmul.mubr.bf16.gmra.mrb[0].mxu0 %v121
    %v361 = vpop.f32.mrb[0].mxu0
    %v362 = vadd.f32 %v160, %v361
    %v363 = vpop.f32.mrb[0].mxu0
    %v364 = vadd.f32 %v164, %v363
    %v365 = vpop.f32.mrb[0].mxu0
    %v366 = vpop.f32.mrb[0].mxu0
    %367 = vdwg.mxu0
    %v368 = vmax.f32 %v362, 0.0
    %v369 = vmax.f32 %v364, 0.0
    %s370 = scalar_lea.vmem %s3, 1
    %v371 = vld [vmem:[%s370] ss:$2 sm:$0x3]
    %v373 = vlaneseq
    %v374 = vshrl.u32 %v373, 7
    %v375 = vsub.s32 0, %v374
    %v376 = vrot.slane %v371, %v375
    %v377 = vlaneseq
    %v378 = vshrl.u32 %v377, 7
    %v379 = vsub.s32 1, %v378
    %v380 = vrot.slane %v371, %v379
    %v383 = vadd.f32 %v368, %v376
    %v384 = vadd.f32 %v369, %v380
    %v387 = vcombine.low %v383, %v384
    %v388 = vcombine.high %v383, %v384
    %391 = vst [vmem:[#allocation8] sm:$0xff] %v387
    %392 = vst [vmem:[#allocation8 + $0x8] sm:$0xff] %v388
    // Predicated region
    $region30: #{tpu_custom_call.1} parent=1 // pred_check
      _
    $region31: #{tpu_custom_call.1} parent=1 // pred_check_branch
      %394 = sbr.rel (0) target = $region33
    $region32: #{tpu_custom_call.1} parent=1 // pred_region
      %s396 = ssub.s32 256, 128
      %397 = vsyncadd [#allocation4], %s396
      %s398 = sshll.u32 [#allocation8], 4
      %s399 = int_to_ptr.vmem [resolvable:$true] %s398
      %404 = dma.vmem_to_hbm [thread:$0]  %s399, 128, %s4, [#allocation4], 128, 128, 8
    $region33: #{tpu_custom_call.1} parent=1 // pred_fallthru
      _
    // Predicated region
    $region34: #{tpu_custom_call.1} parent=1 // pred_check
      _
    $region35: #{tpu_custom_call.1} parent=1 // pred_check_branch
      %406 = sbr.rel (0) target = $region37
    $region36: #{tpu_custom_call.1} parent=1 // pred_region
      %407 = dma.done [#allocation4], 256
    $region37: #{tpu_custom_call.1} parent=1 // pred_fallthru
      _
    %408 = vsyncpa [#allocation3], 1
    %409 = vsyncpa [#allocation6], 1
    %410 = vsyncpa [#allocation4], 1

</llo_original>
